<compile_context>
chip_gen: v6e
topology: v6e:2x2x1
jax: 0.10.0
libtpu: 0.0.40
codegen_flags: <defaults>
</compile_context>

<pallas_src>
import jax
import jax.numpy as jnp
from jax import lax
from jax.experimental import pallas as pl
from jax.experimental.pallas import tpu as pltpu


# ---------------------------------------------------------------------------
# Kernel 1: combined weight,  W_flat[j-th tile] =
#     mean(adapt_input, 0) @ adapt_W_tile^T + adapt_b_tile + W_base_flat_tile
# ---------------------------------------------------------------------------
def _adapt_weight_kernel(adapt_ref, aw_ref, ab_ref, wbase_ref, out_ref):
    # adapt_ref: (Ba, A); aw_ref: (TN, A); ab_ref/wbase_ref/out_ref: (1, TN)
    m = jnp.mean(adapt_ref[...].astype(jnp.float32), axis=0, keepdims=True)  # (1, A)
    proj = lax.dot_general(
        m, aw_ref[...],
        dimension_numbers=(((1,), (1,)), ((), ())),   # contract A with A, no transpose
        preferred_element_type=jnp.float32,
    )                                                  # (1, TN)
    out_ref[...] = proj + ab_ref[...] + wbase_ref[...]


# ---------------------------------------------------------------------------
# Kernel 2: token-mixing linear,  y = x @ W.T + b  (W is [out, in], hoisted)
# ---------------------------------------------------------------------------
def _token_mix_kernel(x_ref, w_ref, b_ref, out_ref):
    # x_ref: (tn, D_in); w_ref: (D_out, D_in); b_ref: (1, D_out); out_ref: (tn, D_out)
    acc = lax.dot_general(
        x_ref[...], w_ref[...],
        dimension_numbers=(((1,), (1,)), ((), ())),   # contract in-dim vs in-dim
        preferred_element_type=jnp.float32,
    )
    out_ref[...] = (acc + b_ref[...]).astype(out_ref.dtype)


# ---------------------------------------------------------------------------
# Tile selection helpers
# ---------------------------------------------------------------------------
def _pick_col_tile(total_cols, target=4096):
    """Lane-dense column tile (multiple of 128 dividing D*D) for kernel 1."""
    if total_cols <= target:
        return total_cols
    t = (target // 128) * 128
    while t >= 128:
        if total_cols % t == 0:
            return t
        t -= 128
    return total_cols  # no 128-multiple divisor: single full-width block


def _pick_row_tile(n_rows, d, target=512, vmem_budget=24 * 1024 * 1024):
    """Row tile for kernel 2, sized to stay inside the default scoped VMEM."""
    bytes_per_row = 2 * 2 * d * 4             # double-buffered x + out (f32 path)
    weight_bytes = d * d * 4 + d * 4          # resident combined weight + bias
    cap = (vmem_budget - weight_bytes) // max(bytes_per_row, 1)
    cap = max(8, (cap // 8) * 8)
    tile = min(target, cap)
    if n_rows <= tile:
        return max(8, ((n_rows + 7) // 8) * 8)
    return tile


# ---------------------------------------------------------------------------
# Wrapper
# ---------------------------------------------------------------------------
def token_mixing(x, adapt_input, params, *, row_tile=512, col_tile=4096):
    B, S, D = x.shape
    Ba, A = adapt_input.shape
    N = B * S
    DD = D * D
    x_flat = x.reshape(N, D)

    w_base = params["weight"]           # (D, D)    [out, in]
    bias = params["bias"]               # (D,)
    adapt_w = params["adapt_weight"]    # (D*D, A)  nn.Linear(adapt_dim, D*D).weight
    adapt_b = params["adapt_bias"]      # (D*D,)

    # ---- Kernel 1: combined weight W = W_base + adapt(mean(a, 0)) -----------
    tn_c = _pick_col_tile(DD, col_tile)
    w_flat = pl.pallas_call(
        _adapt_weight_kernel,
        out_shape=jax.ShapeDtypeStruct((1, DD), jnp.float32),
        grid=(pl.cdiv(DD, tn_c),),
        in_specs=[
            pl.BlockSpec((Ba, A), lambda j: (0, 0)),      # adapt_input (tiny, resident)
            pl.BlockSpec((tn_c, A), lambda j: (j, 0)),    # adapt_w streamed tiles
            pl.BlockSpec((1, tn_c), lambda j: (0, j)),    # adapt_b tile
            pl.BlockSpec((1, tn_c), lambda j: (0, j)),    # W_base flattened tile
        ],
        out_specs=pl.BlockSpec((1, tn_c), lambda j: (0, j)),
        compiler_params=pltpu.CompilerParams(dimension_semantics=("parallel",)),
    )(
        adapt_input,
        adapt_w,
        adapt_b.astype(jnp.float32).reshape(1, DD),
        w_base.astype(jnp.float32).reshape(1, DD),
    )
    w_combined = w_flat.reshape(D, D)   # [out, in] — plain-JAX glue reshape

    # ---- Kernel 2: y = x @ W.T + b -------------------------------------------
    tn_r = _pick_row_tile(N, D, row_tile)
    n_pad = pl.cdiv(N, tn_r) * tn_r
    x_in = x_flat if n_pad == N else jnp.pad(x_flat, ((0, n_pad - N), (0, 0)))

    out_flat = pl.pallas_call(
        _token_mix_kernel,
        out_shape=jax.ShapeDtypeStruct((n_pad, D), x.dtype),
        grid=(n_pad // tn_r,),
        in_specs=[
            pl.BlockSpec((tn_r, D), lambda i: (i, 0)),    # x rows, streamed
            pl.BlockSpec((D, D), lambda i: (0, 0)),       # combined weight, resident
            pl.BlockSpec((1, D), lambda i: (0, 0)),       # bias, resident
        ],
        out_specs=pl.BlockSpec((tn_r, D), lambda i: (i, 0)),
        compiler_params=pltpu.CompilerParams(dimension_semantics=("parallel",)),
    )(x_in, w_combined, bias.astype(jnp.float32).reshape(1, D))

    # TODO(synk): optional bf16 cast of x / w_combined (f32 accumulate) for MXU rate.
    return out_flat[:N].reshape(B, S, D)


# ---------------------------------------------------------------------------
# Pure-JAX reference
# ---------------------------------------------------------------------------
def _reference(x, adapt_input, params):
    B, S, D = x.shape
    x_flat = x.reshape(B * S, D)
    m = jnp.mean(adapt_input, axis=0)
    w_adapt = (params["adapt_weight"] @ m + params["adapt_bias"]).reshape(D, D)
    w = params["weight"] + w_adapt
    out = x_flat @ w.T + params["bias"]
    return out.reshape(B, S, D)


if __name__ == "__main__":
    B, S, D, A = 2, 8, 32, 16   # batch, seq_length, token_dim, adapt_dim

    key = jax.random.PRNGKey(0)
    k_x, k_a, k_w, k_b, k_aw, k_ab = jax.random.split(key, 6)

    x = jax.random.normal(k_x, (B, S, D), dtype=jnp.float32)
    adapt_input = jax.random.normal(k_a, (B, A), dtype=jnp.float32)

    params = {
        # nn.Parameter(torch.randn(out, in)) -> standard normal
        "weight": jax.random.normal(k_w, (D, D), dtype=jnp.float32),
        "bias": jax.random.normal(k_b, (D,), dtype=jnp.float32),
        # nn.Linear(adapt_dim, D*D) weights (deterministic synthetic init)
        "adapt_weight": jax.random.normal(k_aw, (D * D, A), dtype=jnp.float32) * 0.1,
        "adapt_bias": jax.random.normal(k_ab, (D * D,), dtype=jnp.float32) * 0.1,
    }

    out = token_mixing(x, adapt_input, params)
    out = jax.block_until_ready(out)

    ref = _reference(x, adapt_input, params)
    assert out.shape == (B, S, D)
    assert jnp.allclose(out, ref, atol=1e-4, rtol=1e-4), "mismatch vs reference"

    print("KERNEL_OK")
</pallas_src>

<mosaic_0001>
module attributes {stable_mosaic.version = 11 : i64} {
  func.func @_adapt_weight_kernel(%arg0: i32, %arg1: memref<2x16xf32, #tpu.memory_space<vmem>>, %arg2: memref<1024x16xf32, #tpu.memory_space<vmem>>, %arg3: memref<1x1024xf32, #tpu.memory_space<vmem>>, %arg4: memref<1x1024xf32, #tpu.memory_space<vmem>>, %arg5: memref<1x1024xf32, #tpu.memory_space<vmem>>) attributes {dimension_semantics = [#tpu.dimension_semantics<parallel>], iteration_bounds = array<i64: 1>, scalar_prefetch = 0 : i64, scratch_operands = 0 : i64, tpu.core_type = #tpu.core_type<tc>, window_params = [{pipeline_mode = #tpu.pipeline_mode<synchronous>, transform_indices = @transform_0, window_bounds = array<i64: 2, 16>}, {transform_indices = @transform_1, window_bounds = array<i64: 1024, 16>}, {transform_indices = @transform_2, window_bounds = array<i64: 1, 1024>}, {transform_indices = @transform_3, window_bounds = array<i64: 1, 1024>}, {transform_indices = @transform_4, window_bounds = array<i64: 1, 1024>}]} {
    %c0 = arith.constant 0 : index
    %c0_0 = arith.constant 0 : index
    %0 = vector.load %arg1[%c0, %c0_0] : memref<2x16xf32, #tpu.memory_space<vmem>>, vector<2x16xf32>
    %cst = arith.constant dense<0.000000e+00> : vector<16xf32>
    %1 = vector.multi_reduction <add>, %0, %cst [0] : vector<2x16xf32> to vector<16xf32>
    %2 = vector.shape_cast %1 : vector<16xf32> to vector<1x16xf32>
    %cst_1 = arith.constant 2.000000e+00 : f32
    %3 = vector.broadcast %cst_1 : f32 to vector<1x16xf32>
    %4 = arith.divf %2, %3 : vector<1x16xf32>
    %c0_2 = arith.constant 0 : index
    %c0_3 = arith.constant 0 : index
    %5 = vector.load %arg2[%c0_2, %c0_3] : memref<1024x16xf32, #tpu.memory_space<vmem>>, vector<1024x16xf32>
    %cst_4 = arith.constant dense<0.000000e+00> : vector<1x1024xf32>
    %6 = tpu.matmul %4, %5, %cst_4 {dimension_numbers = #tpu.dot_dimension_numbers<[1], [1], [0], [0], [0, 0, 1, 0], [], []>} : vector<1x16xf32>, vector<1024x16xf32>, vector<1x1024xf32> -> vector<1x1024xf32>
    %c0_5 = arith.constant 0 : index
    %c0_6 = arith.constant 0 : index
    %7 = vector.load %arg3[%c0_5, %c0_6] : memref<1x1024xf32, #tpu.memory_space<vmem>>, vector<1x1024xf32>
    %8 = arith.addf %6, %7 : vector<1x1024xf32>
    %c0_7 = arith.constant 0 : index
    %c0_8 = arith.constant 0 : index
    %9 = vector.load %arg4[%c0_7, %c0_8] : memref<1x1024xf32, #tpu.memory_space<vmem>>, vector<1x1024xf32>
    %10 = arith.addf %8, %9 : vector<1x1024xf32>
    %c0_9 = arith.constant 0 : index
    %c0_10 = arith.constant 0 : index
    %11 = vector.load %arg5[%c0_9, %c0_10] : memref<1x1024xf32, #tpu.memory_space<vmem>>, vector<1x1024xf32>
    tpu.vector_store %arg5[%c0_9, %c0_10], %10 {strides = array<i32>} : memref<1x1024xf32, #tpu.memory_space<vmem>>, vector<1x1024xf32>,
    return
  }
  func.func @transform_0(%arg0: i32) -> (i32, i32) {
    %c0_i32 = arith.constant 0 : i32
    %c0_i32_0 = arith.constant 0 : i32
    %c0_i32_1 = arith.constant 0 : i32
    return %c0_i32, %c0_i32_0 : i32, i32
  }
  func.func @transform_1(%arg0: i32) -> (i32, i32) {
    %c0_i32 = arith.constant 0 : i32
    %c0_i32_0 = arith.constant 0 : i32
    return %arg0, %c0_i32 : i32, i32
  }
  func.func @transform_2(%arg0: i32) -> (i32, i32) {
    %c0_i32 = arith.constant 0 : i32
    %c0_i32_0 = arith.constant 0 : i32
    return %c0_i32, %arg0 : i32, i32
  }
  func.func @transform_3(%arg0: i32) -> (i32, i32) {
    %c0_i32 = arith.constant 0 : i32
    %c0_i32_0 = arith.constant 0 : i32
    return %c0_i32, %arg0 : i32, i32
  }
  func.func @transform_4(%arg0: i32) -> (i32, i32) {
    %c0_i32 = arith.constant 0 : i32
    %c0_i32_0 = arith.constant 0 : i32
    return %c0_i32, %arg0 : i32, i32
  }
}

</mosaic_0001>

<llo_original>
// kernel: tpu_custom_call.1
$region0: #{tpu_custom_call.1}
  #allocation0 [shape = 'u32[]', space=smem, size = 0x4, offset = 0x4, fixed_abs, tag = 'smem constant byte address 0x4 - core index']
  #allocation1 [shape = 'u32[144,128]{1,0:T(1,128)}', space=vmem, size = 0x12000, scoped, tag = 'internal scratch']
  %s0 = inlined_call_operand.vmem [shape: f32[2,16], index: 0, kind: input, shape index: {}]
  %s1 = inlined_call_operand.vmem [shape: f32[1024,16], index: 1, kind: input, shape index: {}]
  %s2 = inlined_call_operand.vmem [shape: f32[1,1024], index: 2, kind: input, shape index: {}]
  %s3 = inlined_call_operand.vmem [shape: f32[1,1024], index: 3, kind: input, shape index: {}]
  %s4 = inlined_call_operand.hbm [shape: f32[1,1024], index: 4, kind: output, shape index: {}]
  %s5 = sld [smem:[#allocation0]]
  $region26: #{tpu_custom_call.1} parent=0
    _
  %s7 = ssub.s32 1, %s5
  %s8 = scalar_select 0, %s7, %s5
  $region1: #{tpu_custom_call.1} parent=0
    #allocation2 [shape = 'u8[4096]{0}', space=vmem, size = 0x1000, scoped, tag = 'output window, operand 0, single buffered']
    #allocation3 [shape = 's32[1]{0}', space=sflag, size = 0x4, scoped, tag = 'scoped memory for tpu_custom_call.1']
    %9 = vsyncpa [#allocation3], 0
    // Predicated region
    $region2: #{tpu_custom_call.1} parent=1 // pred_check
      _
    $region3: #{tpu_custom_call.1} parent=1 // pred_check_branch
      %11 = sbr.rel (0) target = $region5
    $region4: #{tpu_custom_call.1} parent=1 // pred_region
      _
    $region5: #{tpu_custom_call.1} parent=1 // pred_fallthru
      _
    // Predicated region
    $region6: #{tpu_custom_call.1} parent=1 // pred_check
      _
    $region7: #{tpu_custom_call.1} parent=1 // pred_check_branch
      %13 = sbr.rel (0) target = $region9
    $region8: #{tpu_custom_call.1} parent=1 // pred_region
      _
    $region9: #{tpu_custom_call.1} parent=1 // pred_fallthru
      _
    // Predicated region
    $region10: #{tpu_custom_call.1} parent=1 // pred_check
      _
    $region11: #{tpu_custom_call.1} parent=1 // pred_check_branch
      %15 = sbr.rel (0) target = $region13
    $region12: #{tpu_custom_call.1} parent=1 // pred_region
      _
    $region13: #{tpu_custom_call.1} parent=1 // pred_fallthru
      _
    // Predicated region
    $region14: #{tpu_custom_call.1} parent=1 // pred_check
      _
    $region15: #{tpu_custom_call.1} parent=1 // pred_check_branch
      %17 = sbr.rel (0) target = $region17
    $region16: #{tpu_custom_call.1} parent=1 // pred_region
      _
    $region17: #{tpu_custom_call.1} parent=1 // pred_fallthru
      _
    %v18 = vld [vmem:[%s0] sm:$0x3]
    %vm19 = vcmask 123904
    %v20 = vsel %vm19, %v18, 0.0
    %v21 = vrot.slane %v20, 4
    %v22 = vadd.f32 %v20, %v21
    %v23 = vrot.slane %v22, 2
    %v24 = vadd.f32 %v22, %v23
    %v25 = vrot.slane %v24, 1
    %v26 = vadd.f32 %v24, %v25
    %v27 = vrcp.pop 2.0
    %v28 = vmul.f32 %v26, %v27
    %v29 = vld [vmem:[%s1] sm:$0xff]
    %v30 = vld [vmem:[%s1 + $0x8] sm:$0xff]
    %v31 = vld [vmem:[%s1 + $0x10] sm:$0xff]
    %v32 = vld [vmem:[%s1 + $0x18] sm:$0xff]
    %v33 = vld [vmem:[%s1 + $0x20] sm:$0xff]
    %v34 = vld [vmem:[%s1 + $0x28] sm:$0xff]
    %v35 = vld [vmem:[%s1 + $0x30] sm:$0xff]
    %v36 = vld [vmem:[%s1 + $0x38] sm:$0xff]
    %v37 = vld [vmem:[%s1 + $0x40] sm:$0xff]
    %v38 = vld [vmem:[%s1 + $0x48] sm:$0xff]
    %v39 = vld [vmem:[%s1 + $0x50] sm:$0xff]
    %v40 = vld [vmem:[%s1 + $0x58] sm:$0xff]
    %v41 = vld [vmem:[%s1 + $0x60] sm:$0xff]
    %v42 = vld [vmem:[%s1 + $0x68] sm:$0xff]
    %v43 = vld [vmem:[%s1 + $0x70] sm:$0xff]
    %v44 = vld [vmem:[%s1 + $0x78] sm:$0xff]
    %v45 = vld [vmem:[%s1 + $0x80] sm:$0xff]
    %v46 = vld [vmem:[%s1 + $0x88] sm:$0xff]
    %v47 = vld [vmem:[%s1 + $0x90] sm:$0xff]
    %v48 = vld [vmem:[%s1 + $0x98] sm:$0xff]
    %v49 = vld [vmem:[%s1 + $0xa0] sm:$0xff]
    %v50 = vld [vmem:[%s1 + $0xa8] sm:$0xff]
    %v51 = vld [vmem:[%s1 + $0xb0] sm:$0xff]
    %v52 = vld [vmem:[%s1 + $0xb8] sm:$0xff]
    %v53 = vld [vmem:[%s1 + $0xc0] sm:$0xff]
    %v54 = vld [vmem:[%s1 + $0xc8] sm:$0xff]
    %v55 = vld [vmem:[%s1 + $0xd0] sm:$0xff]
    %v56 = vld [vmem:[%s1 + $0xd8] sm:$0xff]
    %v57 = vld [vmem:[%s1 + $0xe0] sm:$0xff]
    %v58 = vld [vmem:[%s1 + $0xe8] sm:$0xff]
    %v59 = vld [vmem:[%s1 + $0xf0] sm:$0xff]
    %v60 = vld [vmem:[%s1 + $0xf8] sm:$0xff]
    %v61 = vld [vmem:[%s1 + $0x100] sm:$0xff]
    %v62 = vld [vmem:[%s1 + $0x108] sm:$0xff]
    %v63 = vld [vmem:[%s1 + $0x110] sm:$0xff]
    %v64 = vld [vmem:[%s1 + $0x118] sm:$0xff]
    %v65 = vld [vmem:[%s1 + $0x120] sm:$0xff]
    %v66 = vld [vmem:[%s1 + $0x128] sm:$0xff]
    %v67 = vld [vmem:[%s1 + $0x130] sm:$0xff]
    %v68 = vld [vmem:[%s1 + $0x138] sm:$0xff]
    %v69 = vld [vmem:[%s1 + $0x140] sm:$0xff]
    %v70 = vld [vmem:[%s1 + $0x148] sm:$0xff]
    %v71 = vld [vmem:[%s1 + $0x150] sm:$0xff]
    %v72 = vld [vmem:[%s1 + $0x158] sm:$0xff]
    %v73 = vld [vmem:[%s1 + $0x160] sm:$0xff]
    %v74 = vld [vmem:[%s1 + $0x168] sm:$0xff]
    %v75 = vld [vmem:[%s1 + $0x170] sm:$0xff]
    %v76 = vld [vmem:[%s1 + $0x178] sm:$0xff]
    %v77 = vld [vmem:[%s1 + $0x180] sm:$0xff]
    %v78 = vld [vmem:[%s1 + $0x188] sm:$0xff]
    %v79 = vld [vmem:[%s1 + $0x190] sm:$0xff]
    %v80 = vld [vmem:[%s1 + $0x198] sm:$0xff]
    %v81 = vld [vmem:[%s1 + $0x1a0] sm:$0xff]
    %v82 = vld [vmem:[%s1 + $0x1a8] sm:$0xff]
    %v83 = vld [vmem:[%s1 + $0x1b0] sm:$0xff]
    %v84 = vld [vmem:[%s1 + $0x1b8] sm:$0xff]
    %v85 = vld [vmem:[%s1 + $0x1c0] sm:$0xff]
    %v86 = vld [vmem:[%s1 + $0x1c8] sm:$0xff]
    %v87 = vld [vmem:[%s1 + $0x1d0] sm:$0xff]
    %v88 = vld [vmem:[%s1 + $0x1d8] sm:$0xff]
    %v89 = vld [vmem:[%s1 + $0x1e0] sm:$0xff]
    %v90 = vld [vmem:[%s1 + $0x1e8] sm:$0xff]
    %v91 = vld [vmem:[%s1 + $0x1f0] sm:$0xff]
    %v92 = vld [vmem:[%s1 + $0x1f8] sm:$0xff]
    %v93 = vld [vmem:[%s1 + $0x200] sm:$0xff]
    %v94 = vld [vmem:[%s1 + $0x208] sm:$0xff]
    %v95 = vld [vmem:[%s1 + $0x210] sm:$0xff]
    %v96 = vld [vmem:[%s1 + $0x218] sm:$0xff]
    %v97 = vld [vmem:[%s1 + $0x220] sm:$0xff]
    %v98 = vld [vmem:[%s1 + $0x228] sm:$0xff]
    %v99 = vld [vmem:[%s1 + $0x230] sm:$0xff]
    %v100 = vld [vmem:[%s1 + $0x238] sm:$0xff]
    %v101 = vld [vmem:[%s1 + $0x240] sm:$0xff]
    %v102 = vld [vmem:[%s1 + $0x248] sm:$0xff]
    %v103 = vld [vmem:[%s1 + $0x250] sm:$0xff]
    %v104 = vld [vmem:[%s1 + $0x258] sm:$0xff]
    %v105 = vld [vmem:[%s1 + $0x260] sm:$0xff]
    %v106 = vld [vmem:[%s1 + $0x268] sm:$0xff]
    %v107 = vld [vmem:[%s1 + $0x270] sm:$0xff]
    %v108 = vld [vmem:[%s1 + $0x278] sm:$0xff]
    %v109 = vld [vmem:[%s1 + $0x280] sm:$0xff]
    %v110 = vld [vmem:[%s1 + $0x288] sm:$0xff]
    %v111 = vld [vmem:[%s1 + $0x290] sm:$0xff]
    %v112 = vld [vmem:[%s1 + $0x298] sm:$0xff]
    %v113 = vld [vmem:[%s1 + $0x2a0] sm:$0xff]
    %v114 = vld [vmem:[%s1 + $0x2a8] sm:$0xff]
    %v115 = vld [vmem:[%s1 + $0x2b0] sm:$0xff]
    %v116 = vld [vmem:[%s1 + $0x2b8] sm:$0xff]
    %v117 = vld [vmem:[%s1 + $0x2c0] sm:$0xff]
    %v118 = vld [vmem:[%s1 + $0x2c8] sm:$0xff]
    %v119 = vld [vmem:[%s1 + $0x2d0] sm:$0xff]
    %v120 = vld [vmem:[%s1 + $0x2d8] sm:$0xff]
    %v121 = vld [vmem:[%s1 + $0x2e0] sm:$0xff]
    %v122 = vld [vmem:[%s1 + $0x2e8] sm:$0xff]
    %v123 = vld [vmem:[%s1 + $0x2f0] sm:$0xff]
    %v124 = vld [vmem:[%s1 + $0x2f8] sm:$0xff]
    %v125 = vld [vmem:[%s1 + $0x300] sm:$0xff]
    %v126 = vld [vmem:[%s1 + $0x308] sm:$0xff]
    %v127 = vld [vmem:[%s1 + $0x310] sm:$0xff]
    %v128 = vld [vmem:[%s1 + $0x318] sm:$0xff]
    %v129 = vld [vmem:[%s1 + $0x320] sm:$0xff]
    %v130 = vld [vmem:[%s1 + $0x328] sm:$0xff]
    %v131 = vld [vmem:[%s1 + $0x330] sm:$0xff]
    %v132 = vld [vmem:[%s1 + $0x338] sm:$0xff]
    %v133 = vld [vmem:[%s1 + $0x340] sm:$0xff]
    %v134 = vld [vmem:[%s1 + $0x348] sm:$0xff]
    %v135 = vld [vmem:[%s1 + $0x350] sm:$0xff]
    %v136 = vld [vmem:[%s1 + $0x358] sm:$0xff]
    %v137 = vld [vmem:[%s1 + $0x360] sm:$0xff]
    %v138 = vld [vmem:[%s1 + $0x368] sm:$0xff]
    %v139 = vld [vmem:[%s1 + $0x370] sm:$0xff]
    %v140 = vld [vmem:[%s1 + $0x378] sm:$0xff]
    %v141 = vld [vmem:[%s1 + $0x380] sm:$0xff]
    %v142 = vld [vmem:[%s1 + $0x388] sm:$0xff]
    %v143 = vld [vmem:[%s1 + $0x390] sm:$0xff]
    %v144 = vld [vmem:[%s1 + $0x398] sm:$0xff]
    %v145 = vld [vmem:[%s1 + $0x3a0] sm:$0xff]
    %v146 = vld [vmem:[%s1 + $0x3a8] sm:$0xff]
    %v147 = vld [vmem:[%s1 + $0x3b0] sm:$0xff]
    %v148 = vld [vmem:[%s1 + $0x3b8] sm:$0xff]
    %v149 = vld [vmem:[%s1 + $0x3c0] sm:$0xff]
    %v150 = vld [vmem:[%s1 + $0x3c8] sm:$0xff]
    %v151 = vld [vmem:[%s1 + $0x3d0] sm:$0xff]
    %v152 = vld [vmem:[%s1 + $0x3d8] sm:$0xff]
    %v153 = vld [vmem:[%s1 + $0x3e0] sm:$0xff]
    %v154 = vld [vmem:[%s1 + $0x3e8] sm:$0xff]
    %v155 = vld [vmem:[%s1 + $0x3f0] sm:$0xff]
    %v156 = vld [vmem:[%s1 + $0x3f8] sm:$0xff]
    %v157 = vld [vmem:[%s2] sm:$0xff]
    %v159 = vlaneseq
    %v160 = vshrl.u32 %v159, 7
    %v161 = vsub.s32 0, %v160
    %v162 = vrot.slane %v157, %v161
    %v163 = vlaneseq
    %v164 = vshrl.u32 %v163, 7
    %v165 = vsub.s32 1, %v164
    %v166 = vrot.slane %v157, %v165
    %v167 = vlaneseq
    %v168 = vshrl.u32 %v167, 7
    %v169 = vsub.s32 2, %v168
    %v170 = vrot.slane %v157, %v169
    %v171 = vlaneseq
    %v172 = vshrl.u32 %v171, 7
    %v173 = vsub.s32 3, %v172
    %v174 = vrot.slane %v157, %v173
    %v175 = vlaneseq
    %v176 = vshrl.u32 %v175, 7
    %v177 = vsub.s32 4, %v176
    %v178 = vrot.slane %v157, %v177
    %v179 = vlaneseq
    %v180 = vshrl.u32 %v179, 7
    %v181 = vsub.s32 5, %v180
    %v182 = vrot.slane %v157, %v181
    %v183 = vlaneseq
    %v184 = vshrl.u32 %v183, 7
    %v185 = vsub.s32 6, %v184
    %v186 = vrot.slane %v157, %v185
    %v187 = vlaneseq
    %v188 = vshrl.u32 %v187, 7
    %v189 = vsub.s32 7, %v188
    %v190 = vrot.slane %v157, %v189
    %vm199 = vcmask 130048
    %v201 = vsel %vm199, %v28, 0
    %v204 = vsel %vm199, %v29, 0
    %v207 = vsel %vm199, %v30, 0
    %v210 = vsel %vm199, %v31, 0
    %v213 = vsel %vm199, %v32, 0
    %v216 = vsel %vm199, %v33, 0
    %v219 = vsel %vm199, %v34, 0
    %v222 = vsel %vm199, %v35, 0
    %v225 = vsel %vm199, %v36, 0
    %v228 = vsel %vm199, %v37, 0
    %v231 = vsel %vm199, %v38, 0
    %v234 = vsel %vm199, %v39, 0
    %v237 = vsel %vm199, %v40, 0
    %v240 = vsel %vm199, %v41, 0
    %v243 = vsel %vm199, %v42, 0
    %v246 = vsel %vm199, %v43, 0
    %v249 = vsel %vm199, %v44, 0
    %v252 = vsel %vm199, %v45, 0
    %v255 = vsel %vm199, %v46, 0
    %v258 = vsel %vm199, %v47, 0
    %v261 = vsel %vm199, %v48, 0
    %v264 = vsel %vm199, %v49, 0
    %v267 = vsel %vm199, %v50, 0
    %v270 = vsel %vm199, %v51, 0
    %v273 = vsel %vm199, %v52, 0
    %v276 = vsel %vm199, %v53, 0
    %v279 = vsel %vm199, %v54, 0
    %v282 = vsel %vm199, %v55, 0
    %v285 = vsel %vm199, %v56, 0
    %v288 = vsel %vm199, %v57, 0
    %v291 = vsel %vm199, %v58, 0
    %v294 = vsel %vm199, %v59, 0
    %v297 = vsel %vm199, %v60, 0
    %v300 = vsel %vm199, %v61, 0
    %v303 = vsel %vm199, %v62, 0
    %v306 = vsel %vm199, %v63, 0
    %v309 = vsel %vm199, %v64, 0
    %v312 = vsel %vm199, %v65, 0
    %v315 = vsel %vm199, %v66, 0
    %v318 = vsel %vm199, %v67, 0
    %v321 = vsel %vm199, %v68, 0
    %v324 = vsel %vm199, %v69, 0
    %v327 = vsel %vm199, %v70, 0
    %v330 = vsel %vm199, %v71, 0
    %v333 = vsel %vm199, %v72, 0
    %v336 = vsel %vm199, %v73, 0
    %v339 = vsel %vm199, %v74, 0
    %v342 = vsel %vm199, %v75, 0
    %v345 = vsel %vm199, %v76, 0
    %v348 = vsel %vm199, %v77, 0
    %v351 = vsel %vm199, %v78, 0
    %v354 = vsel %vm199, %v79, 0
    %v357 = vsel %vm199, %v80, 0
    %v360 = vsel %vm199, %v81, 0
    %v363 = vsel %vm199, %v82, 0
    %v366 = vsel %vm199, %v83, 0
    %v369 = vsel %vm199, %v84, 0
    %v372 = vsel %vm199, %v85, 0
    %v375 = vsel %vm199, %v86, 0
    %v378 = vsel %vm199, %v87, 0
    %v381 = vsel %vm199, %v88, 0
    %v384 = vsel %vm199, %v89, 0
    %v387 = vsel %vm199, %v90, 0
    %v390 = vsel %vm199, %v91, 0
    %v393 = vsel %vm199, %v92, 0
    %v396 = vsel %vm199, %v93, 0
    %v399 = vsel %vm199, %v94, 0
    %v402 = vsel %vm199, %v95, 0
    %v405 = vsel %vm199, %v96, 0
    %v408 = vsel %vm199, %v97, 0
    %v411 = vsel %vm199, %v98, 0
    %v414 = vsel %vm199, %v99, 0
    %v417 = vsel %vm199, %v100, 0
    %v420 = vsel %vm199, %v101, 0
    %v423 = vsel %vm199, %v102, 0
    %v426 = vsel %vm199, %v103, 0
    %v429 = vsel %vm199, %v104, 0
    %v432 = vsel %vm199, %v105, 0
    %v435 = vsel %vm199, %v106, 0
    %v438 = vsel %vm199, %v107, 0
    %v441 = vsel %vm199, %v108, 0
    %v444 = vsel %vm199, %v109, 0
    %v447 = vsel %vm199, %v110, 0
    %v450 = vsel %vm199, %v111, 0
    %v453 = vsel %vm199, %v112, 0
    %v456 = vsel %vm199, %v113, 0
    %v459 = vsel %vm199, %v114, 0
    %v462 = vsel %vm199, %v115, 0
    %v465 = vsel %vm199, %v116, 0
    %v468 = vsel %vm199, %v117, 0
    %v471 = vsel %vm199, %v118, 0
    %v474 = vsel %vm199, %v119, 0
    %v477 = vsel %vm199, %v120, 0
    %v480 = vsel %vm199, %v121, 0
    %v483 = vsel %vm199, %v122, 0
    %v486 = vsel %vm199, %v123, 0
    %v489 = vsel %vm199, %v124, 0
    %v492 = vsel %vm199, %v125, 0
    %v495 = vsel %vm199, %v126, 0
    %v498 = vsel %vm199, %v127, 0
    %v501 = vsel %vm199, %v128, 0
    %v504 = vsel %vm199, %v129, 0
    %v507 = vsel %vm199, %v130, 0
    %v510 = vsel %vm199, %v131, 0
    %v513 = vsel %vm199, %v132, 0
    %v516 = vsel %vm199, %v133, 0
    %v519 = vsel %vm199, %v134, 0
    %v522 = vsel %vm199, %v135, 0
    %v525 = vsel %vm199, %v136, 0
    %v528 = vsel %vm199, %v137, 0
    %v531 = vsel %vm199, %v138, 0
    %v534 = vsel %vm199, %v139, 0
    %v537 = vsel %vm199, %v140, 0
    %v540 = vsel %vm199, %v141, 0
    %v543 = vsel %vm199, %v142, 0
    %v546 = vsel %vm199, %v143, 0
    %v549 = vsel %vm199, %v144, 0
    %v552 = vsel %vm199, %v145, 0
    %v555 = vsel %vm199, %v146, 0
    %v558 = vsel %vm199, %v147, 0
    %v561 = vsel %vm199, %v148, 0
    %v564 = vsel %vm199, %v149, 0
    %v567 = vsel %vm199, %v150, 0
    %v570 = vsel %vm199, %v151, 0
    %v573 = vsel %vm199, %v152, 0
    %v576 = vsel %vm199, %v153, 0
    %v579 = vsel %vm199, %v154, 0
    %v582 = vsel %vm199, %v155, 0
    %v585 = vsel %vm199, %v156, 0
    %587 = vmatprep.subr.mxu0 0.0
    %588 = vmatpush1.xpose.msra.mxu0 %v249
    %589 = vmatprep.subr.mxu0 0.0
    %590 = vmatpush1.xpose.msra.mxu0 %v246
    %591 = vmatprep.subr.mxu0 0.0
    %592 = vmatpush1.xpose.msra.mxu0 %v243
    %593 = vmatprep.subr.mxu0 0.0
    %594 = vmatpush1.xpose.msra.mxu0 %v240
    %595 = vmatprep.subr.mxu0 0.0
    %596 = vmatpush1.xpose.msra.mxu0 %v237
    %597 = vmatprep.subr.mxu0 0.0
    %598 = vmatpush1.xpose.msra.mxu0 %v234
    %599 = vmatprep.subr.mxu0 0.0
    %600 = vmatpush1.xpose.msra.mxu0 %v231
    %601 = vmatprep.subr.mxu0 0.0
    %602 = vmatpush1.xpose.msra.mxu0 %v228
    %603 = vmatprep.subr.mxu0 0.0
    %604 = vmatpush1.xpose.msra.mxu0 %v225
    %605 = vmatprep.subr.mxu0 0.0
    %606 = vmatpush1.xpose.msra.mxu0 %v222
    %607 = vmatprep.subr.mxu0 0.0
    %608 = vmatpush1.xpose.msra.mxu0 %v219
    %609 = vmatprep.subr.mxu0 0.0
    %610 = vmatpush1.xpose.msra.mxu0 %v216
    %611 = vmatprep.subr.mxu0 0.0
    %612 = vmatpush1.xpose.msra.mxu0 %v213
    %613 = vmatprep.subr.mxu0 0.0
    %614 = vmatpush1.xpose.msra.mxu0 %v210
    %615 = vmatprep.subr.mxu0 0.0
    %616 = vmatpush1.xpose.msra.mxu0 %v207
    %617 = vmatprep.subr.mxu0 0.0
    %618 = vmatpush1.xpose.msra.mxu0 %v204
    %619 = vmatprep.subr.mxu0 0.0
    %620 = vmatpush2.xpose.msra.mxu0 %v297
    %621 = vmatprep.subr.mxu0 0.0
    %622 = vmatpush2.xpose.msra.mxu0 %v294
    %623 = vmatprep.subr.mxu0 0.0
    %624 = vmatpush2.xpose.msra.mxu0 %v291
    %625 = vmatprep.subr.mxu0 0.0
    %626 = vmatpush2.xpose.msra.mxu0 %v288
    %627 = vmatprep.subr.mxu0 0.0
    %628 = vmatpush2.xpose.msra.mxu0 %v285
    %629 = vmatprep.subr.mxu0 0.0
    %630 = vmatpush2.xpose.msra.mxu0 %v282
    %631 = vmatprep.subr.mxu0 0.0
    %632 = vmatpush2.xpose.msra.mxu0 %v279
    %633 = vmatprep.subr.mxu0 0.0
    %634 = vmatpush2.xpose.msra.mxu0 %v276
    %635 = vmatprep.subr.mxu0 0.0
    %636 = vmatpush2.xpose.msra.mxu0 %v273
    %637 = vmatprep.subr.mxu0 0.0
    %638 = vmatpush2.xpose.msra.mxu0 %v270
    %639 = vmatprep.subr.mxu0 0.0
    %640 = vmatpush2.xpose.msra.mxu0 %v267
    %641 = vmatprep.subr.mxu0 0.0
    %642 = vmatpush2.xpose.msra.mxu0 %v264
    %643 = vmatprep.subr.mxu0 0.0
    %644 = vmatpush2.xpose.msra.mxu0 %v261
    %645 = vmatprep.subr.mxu0 0.0
    %646 = vmatpush2.xpose.msra.mxu0 %v258
    %647 = vmatprep.subr.mxu0 0.0
    %648 = vmatpush2.xpose.msra.mxu0 %v255
    %649 = vmatprep.subr.mxu0 0.0
    %650 = vmatpush2.xpose.msra.mxu0 %v252
    %651 = vmatprep.mubr.f32.mxu0 0.0
    %652 = vmatmul.mubr.f32.gmra.mxu0 %v201
    %v653 = vpop.f32.mrf.mxu0
    %v654 = vadd.f32 %v162, %v653
    %v655 = vpop.f32.mrf.mxu0
    %v656 = vadd.f32 %v166, %v655
    %657 = vdwg.mxu0
    %658 = vmatprep.subr.mxu0 0.0
    %659 = vmatpush1.xpose.msra.mxu0 %v345
    %660 = vmatprep.subr.mxu0 0.0
    %661 = vmatpush1.xpose.msra.mxu0 %v342
    %662 = vmatprep.subr.mxu0 0.0
    %663 = vmatpush1.xpose.msra.mxu0 %v339
    %664 = vmatprep.subr.mxu0 0.0
    %665 = vmatpush1.xpose.msra.mxu0 %v336
    %666 = vmatprep.subr.mxu0 0.0
    %667 = vmatpush1.xpose.msra.mxu0 %v333
    %668 = vmatprep.subr.mxu0 0.0
    %669 = vmatpush1.xpose.msra.mxu0 %v330
    %670 = vmatprep.subr.mxu0 0.0
    %671 = vmatpush1.xpose.msra.mxu0 %v327
    %672 = vmatprep.subr.mxu0 0.0
    %673 = vmatpush1.xpose.msra.mxu0 %v324
    %674 = vmatprep.subr.mxu0 0.0
    %675 = vmatpush1.xpose.msra.mxu0 %v321
    %676 = vmatprep.subr.mxu0 0.0
    %677 = vmatpush1.xpose.msra.mxu0 %v318
    %678 = vmatprep.subr.mxu0 0.0
    %679 = vmatpush1.xpose.msra.mxu0 %v315
    %680 = vmatprep.subr.mxu0 0.0
    %681 = vmatpush1.xpose.msra.mxu0 %v312
    %682 = vmatprep.subr.mxu0 0.0
    %683 = vmatpush1.xpose.msra.mxu0 %v309
    %684 = vmatprep.subr.mxu0 0.0
    %685 = vmatpush1.xpose.msra.mxu0 %v306
    %686 = vmatprep.subr.mxu0 0.0
    %687 = vmatpush1.xpose.msra.mxu0 %v303
    %688 = vmatprep.subr.mxu0 0.0
    %689 = vmatpush1.xpose.msra.mxu0 %v300
    %690 = vmatprep.subr.mxu0 0.0
    %691 = vmatpush2.xpose.msra.mxu0 %v393
    %692 = vmatprep.subr.mxu0 0.0
    %693 = vmatpush2.xpose.msra.mxu0 %v390
    %694 = vmatprep.subr.mxu0 0.0
    %695 = vmatpush2.xpose.msra.mxu0 %v387
    %696 = vmatprep.subr.mxu0 0.0
    %697 = vmatpush2.xpose.msra.mxu0 %v384
    %698 = vmatprep.subr.mxu0 0.0
    %699 = vmatpush2.xpose.msra.mxu0 %v381
    %700 = vmatprep.subr.mxu0 0.0
    %701 = vmatpush2.xpose.msra.mxu0 %v378
    %702 = vmatprep.subr.mxu0 0.0
    %703 = vmatpush2.xpose.msra.mxu0 %v375
    %704 = vmatprep.subr.mxu0 0.0
    %705 = vmatpush2.xpose.msra.mxu0 %v372
    %706 = vmatprep.subr.mxu0 0.0
    %707 = vmatpush2.xpose.msra.mxu0 %v369
    %708 = vmatprep.subr.mxu0 0.0
    %709 = vmatpush2.xpose.msra.mxu0 %v366
    %710 = vmatprep.subr.mxu0 0.0
    %711 = vmatpush2.xpose.msra.mxu0 %v363
    %712 = vmatprep.subr.mxu0 0.0
    %713 = vmatpush2.xpose.msra.mxu0 %v360
    %714 = vmatprep.subr.mxu0 0.0
    %715 = vmatpush2.xpose.msra.mxu0 %v357
    %716 = vmatprep.subr.mxu0 0.0
    %717 = vmatpush2.xpose.msra.mxu0 %v354
    %718 = vmatprep.subr.mxu0 0.0
    %719 = vmatpush2.xpose.msra.mxu0 %v351
    %720 = vmatprep.subr.mxu0 0.0
    %721 = vmatpush2.xpose.msra.mxu0 %v348
    %722 = vmatprep.mubr.f32.mxu0 0.0
    %723 = vmatmul.mubr.f32.gmra.mxu0 %v201
    %v724 = vpop.f32.mrf.mxu0
    %v725 = vadd.f32 %v170, %v724
    %v726 = vpop.f32.mrf.mxu0
    %v727 = vadd.f32 %v174, %v726
    %728 = vdwg.mxu0
    %729 = vmatprep.subr.mxu0 0.0
    %730 = vmatpush1.xpose.msra.mxu0 %v441
    %731 = vmatprep.subr.mxu0 0.0
    %732 = vmatpush1.xpose.msra.mxu0 %v438
    %733 = vmatprep.subr.mxu0 0.0
    %734 = vmatpush1.xpose.msra.mxu0 %v435
    %735 = vmatprep.subr.mxu0 0.0
    %736 = vmatpush1.xpose.msra.mxu0 %v432
    %737 = vmatprep.subr.mxu0 0.0
    %738 = vmatpush1.xpose.msra.mxu0 %v429
    %739 = vmatprep.subr.mxu0 0.0
    %740 = vmatpush1.xpose.msra.mxu0 %v426
    %741 = vmatprep.subr.mxu0 0.0
    %742 = vmatpush1.xpose.msra.mxu0 %v423
    %743 = vmatprep.subr.mxu0 0.0
    %744 = vmatpush1.xpose.msra.mxu0 %v420
    %745 = vmatprep.subr.mxu0 0.0
    %746 = vmatpush1.xpose.msra.mxu0 %v417
    %747 = vmatprep.subr.mxu0 0.0
    %748 = vmatpush1.xpose.msra.mxu0 %v414
    %749 = vmatprep.subr.mxu0 0.0
    %750 = vmatpush1.xpose.msra.mxu0 %v411
    %751 = vmatprep.subr.mxu0 0.0
    %752 = vmatpush1.xpose.msra.mxu0 %v408
    %753 = vmatprep.subr.mxu0 0.0
    %754 = vmatpush1.xpose.msra.mxu0 %v405
    %755 = vmatprep.subr.mxu0 0.0
    %756 = vmatpush1.xpose.msra.mxu0 %v402
    %757 = vmatprep.subr.mxu0 0.0
    %758 = vmatpush1.xpose.msra.mxu0 %v399
    %759 = vmatprep.subr.mxu0 0.0
    %760 = vmatpush1.xpose.msra.mxu0 %v396
    %761 = vmatprep.subr.mxu0 0.0
    %762 = vmatpush2.xpose.msra.mxu0 %v489
    %763 = vmatprep.subr.mxu0 0.0
    %764 = vmatpush2.xpose.msra.mxu0 %v486
    %765 = vmatprep.subr.mxu0 0.0
    %766 = vmatpush2.xpose.msra.mxu0 %v483
    %767 = vmatprep.subr.mxu0 0.0
    %768 = vmatpush2.xpose.msra.mxu0 %v480
    %769 = vmatprep.subr.mxu0 0.0
    %770 = vmatpush2.xpose.msra.mxu0 %v477
    %771 = vmatprep.subr.mxu0 0.0
    %772 = vmatpush2.xpose.msra.mxu0 %v474
    %773 = vmatprep.subr.mxu0 0.0
    %774 = vmatpush2.xpose.msra.mxu0 %v471
    %775 = vmatprep.subr.mxu0 0.0
    %776 = vmatpush2.xpose.msra.mxu0 %v468
    %777 = vmatprep.subr.mxu0 0.0
    %778 = vmatpush2.xpose.msra.mxu0 %v465
    %779 = vmatprep.subr.mxu0 0.0
    %780 = vmatpush2.xpose.msra.mxu0 %v462
    %781 = vmatprep.subr.mxu0 0.0
    %782 = vmatpush2.xpose.msra.mxu0 %v459
    %783 = vmatprep.subr.mxu0 0.0
    %784 = vmatpush2.xpose.msra.mxu0 %v456
    %785 = vmatprep.subr.mxu0 0.0
    %786 = vmatpush2.xpose.msra.mxu0 %v453
    %787 = vmatprep.subr.mxu0 0.0
    %788 = vmatpush2.xpose.msra.mxu0 %v450
    %789 = vmatprep.subr.mxu0 0.0
    %790 = vmatpush2.xpose.msra.mxu0 %v447
    %791 = vmatprep.subr.mxu0 0.0
    %792 = vmatpush2.xpose.msra.mxu0 %v444
    %793 = vmatprep.mubr.f32.mxu0 0.0
    %794 = vmatmul.mubr.f32.gmra.mxu0 %v201
    %v795 = vpop.f32.mrf.mxu0
    %v796 = vadd.f32 %v178, %v795
    %v797 = vpop.f32.mrf.mxu0
    %v798 = vadd.f32 %v182, %v797
    %799 = vdwg.mxu0
    %800 = vmatprep.subr.mxu0 0.0
    %801 = vmatpush1.xpose.msra.mxu0 %v537
    %802 = vmatprep.subr.mxu0 0.0
    %803 = vmatpush1.xpose.msra.mxu0 %v534
    %804 = vmatprep.subr.mxu0 0.0
    %805 = vmatpush1.xpose.msra.mxu0 %v531
    %806 = vmatprep.subr.mxu0 0.0
    %807 = vmatpush1.xpose.msra.mxu0 %v528
    %808 = vmatprep.subr.mxu0 0.0
    %809 = vmatpush1.xpose.msra.mxu0 %v525
    %810 = vmatprep.subr.mxu0 0.0
    %811 = vmatpush1.xpose.msra.mxu0 %v522
    %812 = vmatprep.subr.mxu0 0.0
    %813 = vmatpush1.xpose.msra.mxu0 %v519
    %814 = vmatprep.subr.mxu0 0.0
    %815 = vmatpush1.xpose.msra.mxu0 %v516
    %816 = vmatprep.subr.mxu0 0.0
    %817 = vmatpush1.xpose.msra.mxu0 %v513
    %818 = vmatprep.subr.mxu0 0.0
    %819 = vmatpush1.xpose.msra.mxu0 %v510
    %820 = vmatprep.subr.mxu0 0.0
    %821 = vmatpush1.xpose.msra.mxu0 %v507
    %822 = vmatprep.subr.mxu0 0.0
    %823 = vmatpush1.xpose.msra.mxu0 %v504
    %824 = vmatprep.subr.mxu0 0.0
    %825 = vmatpush1.xpose.msra.mxu0 %v501
    %826 = vmatprep.subr.mxu0 0.0
    %827 = vmatpush1.xpose.msra.mxu0 %v498
    %828 = vmatprep.subr.mxu0 0.0
    %829 = vmatpush1.xpose.msra.mxu0 %v495
    %830 = vmatprep.subr.mxu0 0.0
    %831 = vmatpush1.xpose.msra.mxu0 %v492
    %832 = vmatprep.subr.mxu0 0.0
    %833 = vmatpush2.xpose.msra.mxu0 %v585
    %834 = vmatprep.subr.mxu0 0.0
    %835 = vmatpush2.xpose.msra.mxu0 %v582
    %836 = vmatprep.subr.mxu0 0.0
    %837 = vmatpush2.xpose.msra.mxu0 %v579
    %838 = vmatprep.subr.mxu0 0.0
    %839 = vmatpush2.xpose.msra.mxu0 %v576
    %840 = vmatprep.subr.mxu0 0.0
    %841 = vmatpush2.xpose.msra.mxu0 %v573
    %842 = vmatprep.subr.mxu0 0.0
    %843 = vmatpush2.xpose.msra.mxu0 %v570
    %844 = vmatprep.subr.mxu0 0.0
    %845 = vmatpush2.xpose.msra.mxu0 %v567
    %846 = vmatprep.subr.mxu0 0.0
    %847 = vmatpush2.xpose.msra.mxu0 %v564
    %848 = vmatprep.subr.mxu0 0.0
    %849 = vmatpush2.xpose.msra.mxu0 %v561
    %850 = vmatprep.subr.mxu0 0.0
    %851 = vmatpush2.xpose.msra.mxu0 %v558
    %852 = vmatprep.subr.mxu0 0.0
    %853 = vmatpush2.xpose.msra.mxu0 %v555
    %854 = vmatprep.subr.mxu0 0.0
    %855 = vmatpush2.xpose.msra.mxu0 %v552
    %856 = vmatprep.subr.mxu0 0.0
    %857 = vmatpush2.xpose.msra.mxu0 %v549
    %858 = vmatprep.subr.mxu0 0.0
    %859 = vmatpush2.xpose.msra.mxu0 %v546
    %860 = vmatprep.subr.mxu0 0.0
    %861 = vmatpush2.xpose.msra.mxu0 %v543
    %862 = vmatprep.subr.mxu0 0.0
    %863 = vmatpush2.xpose.msra.mxu0 %v540
    %864 = vmatprep.mubr.f32.mxu0 0.0
    %865 = vmatmul.mubr.f32.gmra.mxu0 %v201
    %v866 = vpop.f32.mrf.mxu0
    %v867 = vadd.f32 %v186, %v866
    %v868 = vpop.f32.mrf.mxu0
    %v869 = vadd.f32 %v190, %v868
    %870 = vdwg.mxu0
    %v871 = vld [vmem:[%s3] sm:$0xff]
    %v873 = vlaneseq
    %v874 = vshrl.u32 %v873, 7
    %v875 = vsub.s32 0, %v874
    %v876 = vrot.slane %v871, %v875
    %v877 = vlaneseq
    %v878 = vshrl.u32 %v877, 7
    %v879 = vsub.s32 1, %v878
    %v880 = vrot.slane %v871, %v879
    %v881 = vlaneseq
    %v882 = vshrl.u32 %v881, 7
    %v883 = vsub.s32 2, %v882
    %v884 = vrot.slane %v871, %v883
    %v885 = vlaneseq
    %v886 = vshrl.u32 %v885, 7
    %v887 = vsub.s32 3, %v886
    %v888 = vrot.slane %v871, %v887
    %v889 = vlaneseq
    %v890 = vshrl.u32 %v889, 7
    %v891 = vsub.s32 4, %v890
    %v892 = vrot.slane %v871, %v891
    %v893 = vlaneseq
    %v894 = vshrl.u32 %v893, 7
    %v895 = vsub.s32 5, %v894
    %v896 = vrot.slane %v871, %v895
    %v897 = vlaneseq
    %v898 = vshrl.u32 %v897, 7
    %v899 = vsub.s32 6, %v898
    %v900 = vrot.slane %v871, %v899
    %v901 = vlaneseq
    %v902 = vshrl.u32 %v901, 7
    %v903 = vsub.s32 7, %v902
    %v904 = vrot.slane %v871, %v903
    %v913 = vadd.f32 %v654, %v876
    %v914 = vadd.f32 %v656, %v880
    %v915 = vadd.f32 %v725, %v884
    %v916 = vadd.f32 %v727, %v888
    %v917 = vadd.f32 %v796, %v892
    %v918 = vadd.f32 %v798, %v896
    %v919 = vadd.f32 %v867, %v900
    %v920 = vadd.f32 %v869, %v904
    %v929 = vcombine.low %v913, %v914
    %v930 = vcombine.low %v915, %v916
    %v931 = vcombine.low %v917, %v918
    %v932 = vcombine.low %v919, %v920
    %v934 = vunpack.c.l.s4 1966171168
    %v935 = vunpack.c.0.s8 %v934
    %v936 = vlaneseq
    %v937 = vshrl.u32 %v936, 7
    %v938 = vsub.s32 %v935, %v937
    %v939 = vrot.slane %v929, %v938
    %v941 = vunpack.c.l.s4 1966171168
    %v942 = vunpack.c.0.s8 %v941
    %v943 = vlaneseq
    %v944 = vshrl.u32 %v943, 7
    %v945 = vsub.s32 %v942, %v944
    %v946 = vrot.slane %v930, %v945
    %v948 = vunpack.c.l.s4 1966171168
    %v949 = vunpack.c.0.s8 %v948
    %v950 = vlaneseq
    %v951 = vshrl.u32 %v950, 7
    %v952 = vsub.s32 %v949, %v951
    %v953 = vrot.slane %v931, %v952
    %v955 = vunpack.c.l.s4 1966171168
    %v956 = vunpack.c.0.s8 %v955
    %v957 = vlaneseq
    %v958 = vshrl.u32 %v957, 7
    %v959 = vsub.s32 %v956, %v958
    %v960 = vrot.slane %v932, %v959
    %v961 = vcombine.low %v939, %v946
    %v962 = vcombine.low %v953, %v960
    %v964 = vunpack.c.l.s4 1966171168
    %v965 = vunpack.c.0.s8 %v964
    %v966 = vlaneseq
    %v967 = vshrl.u32 %v966, 7
    %v968 = vsub.s32 %v965, %v967
    %v969 = vrot.slane %v961, %v968
    %v971 = vunpack.c.l.s4 1966171168
    %v972 = vunpack.c.0.s8 %v971
    %v973 = vlaneseq
    %v974 = vshrl.u32 %v973, 7
    %v975 = vsub.s32 %v972, %v974
    %v976 = vrot.slane %v962, %v975
    %v977 = vcombine.low %v969, %v976
    %979 = vst [vmem:[#allocation2] sm:$0xff] %v977
    // Predicated region
    $region18: #{tpu_custom_call.1} parent=1 // pred_check
      _
    $region19: #{tpu_custom_call.1} parent=1 // pred_check_branch
      %981 = sbr.rel (0) target = $region21
    $region20: #{tpu_custom_call.1} parent=1 // pred_region
      %s983 = ssub.s32 128, 128
      %984 = vsyncadd [#allocation3], %s983
      %s986 = sshll.u32 [#allocation2], 4
      %s987 = int_to_ptr.vmem [resolvable:$true] %s986
      %989 = dma.vmem_to_hbm [thread:$0]  %s987, 128, %s4, [#allocation3]
    $region21: #{tpu_custom_call.1} parent=1 // pred_fallthru
      _
    // Predicated region
    $region22: #{tpu_custom_call.1} parent=1 // pred_check
      _
    $region23: #{tpu_custom_call.1} parent=1 // pred_check_branch
      %991 = sbr.rel (0) target = $region25
    $region24: #{tpu_custom_call.1} parent=1 // pred_region
      %992 = dma.done [#allocation3], 128
    $region25: #{tpu_custom_call.1} parent=1 // pred_fallthru
      _
    %993 = vsyncpa [#allocation3], 1

</llo_original>
